<compile_context>
chip_gen: v6e
topology: v6e:2x2x1
jax: 0.10.0
libtpu: 0.0.40
codegen_flags: <defaults>
</compile_context>

<pallas_src>
import math
import jax
import jax.numpy as jnp
from jax.experimental import pallas as pl
from jax.experimental.pallas import tpu as pltpu


def _round_up(x, m):
    return ((x + m - 1) // m) * m


def _pick_tile(dim_p, target):
    """Largest multiple of 128 that divides dim_p (itself a multiple of 128) and is <= target."""
    t = max((min(target, dim_p) // 128) * 128, 128)
    while dim_p % t:
        t -= 128
    return t


# ------------------------------- kernels -------------------------------

def _noisy_train_kernel(x_ref, wmu_ref, wsig_ref, ein_ref, eout_ref, b_ref,
                        o_ref, acc_sig_ref):
    # grid = (batch_tiles, out_tiles, in_tiles); axis 2 is the contraction axis.
    k = pl.program_id(2)

    @pl.when(k == 0)
    def _():
        o_ref[...] = jnp.zeros_like(o_ref)            # f32 output block doubles as mu-accumulator
        acc_sig_ref[...] = jnp.zeros_like(acc_sig_ref)

    x = x_ref[...]                                     # (TB, TK)
    # Factorized noise:  x @ (mu + sigma * outer(eps_out, eps_in)).T
    #                 == x @ mu_T + eps_out * ((x * eps_in) @ sigma_T)
    o_ref[...] += jnp.dot(x, wmu_ref[...], preferred_element_type=jnp.float32)
    acc_sig_ref[...] += jnp.dot(x * ein_ref[...], wsig_ref[...],
                                preferred_element_type=jnp.float32)

    @pl.when(k == pl.num_programs(2) - 1)
    def _():
        # eps_out scaling + bias applied exactly once per output tile.
        o_ref[...] += eout_ref[...] * acc_sig_ref[...] + b_ref[...]


def _dense_kernel(x_ref, w_ref, b_ref, o_ref):
    # Single-matmul path: eval mode (w = mu) or large-B training (w = mu + sigma*outer(eps)).
    k = pl.program_id(2)

    @pl.when(k == 0)
    def _():
        o_ref[...] = jnp.zeros_like(o_ref)

    o_ref[...] += jnp.dot(x_ref[...], w_ref[...], preferred_element_type=jnp.float32)

    @pl.when(k == pl.num_programs(2) - 1)
    def _():
        o_ref[...] += b_ref[...]


# ------------------------------- one-time weight layout -------------------------------

def prepare_noisy_linear_weights(weight_mu, weight_sigma):
    """Transpose weights to (In, Out) and zero-pad to multiples of 128.

    Call ONCE at init / after a parameter update — not per forward — so that no
    weight-sized HBM copies happen on the forward path.
    """
    Out, In = weight_mu.shape
    In_p, Out_p = _round_up(In, 128), _round_up(Out, 128)
    wmu_t = jnp.pad(weight_mu.astype(jnp.float32).T,
                    ((0, In_p - In), (0, Out_p - Out)))
    wsig_t = jnp.pad(weight_sigma.astype(jnp.float32).T,
                     ((0, In_p - In), (0, Out_p - Out)))
    return dict(wmu_t=wmu_t, wsig_t=wsig_t, in_features=In, out_features=Out)


# ------------------------------- forward wrapper -------------------------------

def noisy_linear(x, prepared, bias_mu, bias_sigma,
                 eps_in=None, eps_out=None, bias_epsilon=None, *,
                 training=True, tile_b=256, tile_n=512, tile_k=1024,
                 dense_switch_batch=1024):
    """Forward pass of the factorized NoisyNet linear layer.

    training=True :  y = x @ (w_mu + w_sigma * outer(eps_out, eps_in)).T
                         + (b_mu + b_sigma * bias_epsilon)
    training=False:  y = x @ w_mu.T + b_mu

    `prepared` comes from prepare_noisy_linear_weights(weight_mu, weight_sigma).
    """
    wmu_t, wsig_t = prepared["wmu_t"], prepared["wsig_t"]
    In, Out = prepared["in_features"], prepared["out_features"]
    In_p, Out_p = wmu_t.shape
    B = x.shape[0]
    out_dtype = x.dtype

    # ---- tile sizes that divide the x128-padded dims ----
    TK = _pick_tile(In_p, tile_k)
    TN = _pick_tile(Out_p, tile_n)
    B_p8 = _round_up(B, 8)
    if B_p8 <= tile_b:
        TB, B_p = B_p8, B_p8
    else:
        TB = _round_up(tile_b, 8)
        B_p = _round_up(B, TB)
    # v7x megacore: keep >= 2 "parallel" tiles whenever Out allows it (no-op on v5e/v6e).
    if (B_p // TB) * (Out_p // TN) < 2 and Out_p >= 256:
        TN = _pick_tile(Out_p, Out_p // 2)

    nb, nn, nk = B_p // TB, Out_p // TN, In_p // TK
    grid = (nb, nn, nk)

    # x is per-call data: pad to (B_p, In_p) with zeros (no effect on the result).
    x_p = jnp.pad(x.astype(jnp.float32), ((0, B_p - B), (0, In_p - In)))

    x_spec = pl.BlockSpec((TB, TK), lambda b, n, k: (b, k))
    w_spec = pl.BlockSpec((TK, TN), lambda b, n, k: (k, n))
    row_k_spec = pl.BlockSpec((1, TK), lambda b, n, k: (0, k))
    row_n_spec = pl.BlockSpec((1, TN), lambda b, n, k: (0, n))
    out_spec = pl.BlockSpec((TB, TN), lambda b, n, k: (b, n))

    compiler_params = pltpu.CompilerParams(
        dimension_semantics=("parallel", "parallel", "arbitrary"),
        vmem_limit_bytes=32 * 1024 * 1024,   # safe scoped budget on v5e/v6e/v7x
    )

    def _launch(kernel, in_specs, scratch_shapes, cost, args):
        return pl.pallas_call(
            kernel,
            out_shape=jax.ShapeDtypeStruct((B_p, Out_p), jnp.float32),
            grid_spec=pltpu.PrefetchScalarGridSpec(
                num_scalar_prefetch=0,
                grid=grid,
                in_specs=in_specs,
                out_specs=out_spec,
                scratch_shapes=scratch_shapes),
            compiler_params=compiler_params,
            cost_estimate=cost,
        )(*args)

    # Advisory byte counts: x blocks are re-streamed per Out tile, weight blocks per batch tile.
    dense_bytes = 4 * (B_p * In_p * nn + In_p * Out_p * nb
                       + Out_p * nb * nk + B_p * Out_p)
    dense_cost = pl.CostEstimate(flops=2 * B_p * In_p * Out_p + B_p * Out_p,
                                 transcendentals=0, bytes_accessed=dense_bytes)

    if training:
        assert eps_in is not None and eps_out is not None and bias_epsilon is not None
        b_eff = bias_mu + bias_sigma * bias_epsilon        # tiny O(Out) wrapper op
        b_row = jnp.pad(b_eff.astype(jnp.float32), (0, Out_p - Out)).reshape(1, Out_p)

        if B >= dense_switch_batch:
            # MXU-bound regime: one O(In*Out) weight materialization beats doubling the
            # matmul work in the factorized path.
            ein_p = jnp.pad(eps_in.astype(jnp.float32), (0, In_p - In))
            eout_p = jnp.pad(eps_out.astype(jnp.float32), (0, Out_p - Out))
            w_eff_t = wmu_t + wsig_t * (ein_p[:, None] * eout_p[None, :])
            y_p = _launch(_dense_kernel, [x_spec, w_spec, row_n_spec], [],
                          dense_cost, (x_p, w_eff_t, b_row))
        else:
            ein_row = jnp.pad(eps_in.astype(jnp.float32), (0, In_p - In)).reshape(1, In_p)
            eout_row = jnp.pad(eps_out.astype(jnp.float32), (0, Out_p - Out)).reshape(1, Out_p)
            fact_bytes = 4 * (B_p * In_p * nn + 2 * In_p * Out_p * nb
                              + In_p * nb * nn + 2 * Out_p * nb * nk + B_p * Out_p)
            fact_cost = pl.CostEstimate(flops=4 * B_p * In_p * Out_p + 3 * B_p * Out_p,
                                        transcendentals=0, bytes_accessed=fact_bytes)
            y_p = _launch(
                _noisy_train_kernel,
                [x_spec, w_spec, w_spec, row_k_spec, row_n_spec, row_n_spec],
                [pltpu.VMEM((TB, TN), jnp.float32)],     # sigma-path accumulator
                fact_cost,
                (x_p, wmu_t, wsig_t, ein_row, eout_row, b_row))
    else:
        # Eval path: only x, weight_mu, bias_mu ever leave HBM.
        b_row = jnp.pad(bias_mu.astype(jnp.float32), (0, Out_p - Out)).reshape(1, Out_p)
        y_p = _launch(_dense_kernel, [x_spec, w_spec, row_n_spec], [],
                      dense_cost, (x_p, wmu_t, b_row))

    return y_p[:B, :Out].astype(out_dtype)


# ---------------- parameter / noise initialization (mirrors the torch module) ----------------

def _scale_noise(key, size):
    x = jax.random.normal(key, (size,), dtype=jnp.float32)
    return jnp.sign(x) * jnp.sqrt(jnp.abs(x))


def init_noisy_linear(key, in_features, out_features, std_init=0.5):
    k_wmu, k_bmu, k_ein, k_eout, k_beps = jax.random.split(key, 5)
    mu_range = 1.0 / math.sqrt(in_features)
    weight_mu = jax.random.uniform(k_wmu, (out_features, in_features),
                                   minval=-mu_range, maxval=mu_range, dtype=jnp.float32)
    weight_sigma = jnp.full((out_features, in_features),
                            std_init / math.sqrt(in_features), dtype=jnp.float32)
    bias_mu = jax.random.uniform(k_bmu, (out_features,),
                                 minval=-mu_range, maxval=mu_range, dtype=jnp.float32)
    bias_sigma = jnp.full((out_features,), std_init / math.sqrt(out_features),
                          dtype=jnp.float32)
    eps_in = _scale_noise(k_ein, in_features)      # factorized noise vectors
    eps_out = _scale_noise(k_eout, out_features)   # weight_epsilon == outer(eps_out, eps_in)
    bias_epsilon = _scale_noise(k_beps, out_features)
    return dict(weight_mu=weight_mu, weight_sigma=weight_sigma,
                bias_mu=bias_mu, bias_sigma=bias_sigma,
                eps_in=eps_in, eps_out=eps_out, bias_epsilon=bias_epsilon)


if __name__ == "__main__":
    key = jax.random.PRNGKey(0)
    k_params, k_x, k_x2 = jax.random.split(key, 3)

    # ---- small shapes (typical Rainbow head) ----
    batch, in_features, out_features = 2, 32, 16
    p = init_noisy_linear(k_params, in_features, out_features, std_init=0.5)
    prepared = prepare_noisy_linear_weights(p["weight_mu"], p["weight_sigma"])
    x = jax.random.normal(k_x, (batch, in_features), dtype=jnp.float32)

    y_train = noisy_linear(x, prepared, p["bias_mu"], p["bias_sigma"],
                           eps_in=p["eps_in"], eps_out=p["eps_out"],
                           bias_epsilon=p["bias_epsilon"], training=True)
    y_eval = noisy_linear(x, prepared, p["bias_mu"], p["bias_sigma"], training=False)
    jax.block_until_ready((y_train, y_eval))

    weight_epsilon = jnp.outer(p["eps_out"], p["eps_in"])   # epsilon_out.ger(epsilon_in)
    w_eff = p["weight_mu"] + p["weight_sigma"] * weight_epsilon
    b_eff = p["bias_mu"] + p["bias_sigma"] * p["bias_epsilon"]
    ref_train = x @ w_eff.T + b_eff
    ref_eval = x @ p["weight_mu"].T + p["bias_mu"]
    assert jnp.allclose(y_train, ref_train, atol=1e-5, rtol=1e-5), "train-mode mismatch"
    assert jnp.allclose(y_eval, ref_eval, atol=1e-5, rtol=1e-5), "eval-mode mismatch"

    # ---- non-128-friendly shape: exercises x128 padding, multi-tile grid, megacore split ----
    batch2, in2, out2 = 48, 300, 200
    p2 = init_noisy_linear(k_params, in2, out2, std_init=0.5)
    prepared2 = prepare_noisy_linear_weights(p2["weight_mu"], p2["weight_sigma"])
    x2 = jax.random.normal(k_x2, (batch2, in2), dtype=jnp.float32)
    y2 = noisy_linear(x2, prepared2, p2["bias_mu"], p2["bias_sigma"],
                      eps_in=p2["eps_in"], eps_out=p2["eps_out"],
                      bias_epsilon=p2["bias_epsilon"], training=True)
    # Force the large-B single-matmul path on the same data to validate the switch.
    y2_dense = noisy_linear(x2, prepared2, p2["bias_mu"], p2["bias_sigma"],
                            eps_in=p2["eps_in"], eps_out=p2["eps_out"],
                            bias_epsilon=p2["bias_epsilon"], training=True,
                            dense_switch_batch=1)
    jax.block_until_ready((y2, y2_dense))
    w_eff2 = p2["weight_mu"] + p2["weight_sigma"] * jnp.outer(p2["eps_out"], p2["eps_in"])
    ref2 = x2 @ w_eff2.T + (p2["bias_mu"] + p2["bias_sigma"] * p2["bias_epsilon"])
    assert jnp.allclose(y2, ref2, atol=1e-3, rtol=1e-3), "padded-shape factorized mismatch"
    assert jnp.allclose(y2_dense, ref2, atol=1e-3, rtol=1e-3), "padded-shape dense mismatch"

    print("KERNEL_OK")
</pallas_src>

<mosaic_0001>
module attributes {stable_mosaic.version = 11 : i64} {
  func.func @_noisy_train_kernel(%arg0: i32, %arg1: i32, %arg2: i32, %arg3: memref<8x128xf32, #tpu.memory_space<vmem>>, %arg4: memref<128x128xf32, #tpu.memory_space<vmem>>, %arg5: memref<128x128xf32, #tpu.memory_space<vmem>>, %arg6: memref<1x128xf32, #tpu.memory_space<vmem>>, %arg7: memref<1x128xf32, #tpu.memory_space<vmem>>, %arg8: memref<1x128xf32, #tpu.memory_space<vmem>>, %arg9: memref<8x128xf32, #tpu.memory_space<vmem>>, %arg10: memref<8x128xf32, #tpu.memory_space<vmem>>) attributes {dimension_semantics = [#tpu.dimension_semantics<parallel>, #tpu.dimension_semantics<parallel>, #tpu.dimension_semantics<arbitrary>], iteration_bounds = array<i64: 1, 1, 1>, scalar_prefetch = 0 : i64, scratch_operands = 1 : i64, tpu.core_type = #tpu.core_type<tc>, window_params = [{transform_indices = @transform_0, window_bounds = array<i64: 8, 128>}, {transform_indices = @transform_1, window_bounds = array<i64: 128, 128>}, {transform_indices = @transform_2, window_bounds = array<i64: 128, 128>}, {transform_indices = @transform_3, window_bounds = array<i64: 1, 128>}, {transform_indices = @transform_4, window_bounds = array<i64: 1, 128>}, {transform_indices = @transform_5, window_bounds = array<i64: 1, 128>}, {transform_indices = @transform_6, window_bounds = array<i64: 8, 128>}]} {
    %c0_i32 = arith.constant 0 : i32
    %0 = arith.cmpi eq, %arg2, %c0_i32 : i32
    %1 = arith.extui %0 : i1 to i32
    %c0_i32_0 = arith.constant 0 : i32
    %2 = arith.cmpi ne, %1, %c0_i32_0 : i32
    scf.if %2 {
      %cst_19 = arith.constant 0.000000e+00 : f32
      %20 = vector.broadcast %cst_19 : f32 to vector<8x128xf32>
      %c0_20 = arith.constant 0 : index
      %c0_21 = arith.constant 0 : index
      %21 = vector.load %arg9[%c0_20, %c0_21] : memref<8x128xf32, #tpu.memory_space<vmem>>, vector<8x128xf32>
      tpu.vector_store %arg9[%c0_20, %c0_21], %20 {strides = array<i32>} : memref<8x128xf32, #tpu.memory_space<vmem>>, vector<8x128xf32>,
      %cst_22 = arith.constant 0.000000e+00 : f32
      %22 = vector.broadcast %cst_22 : f32 to vector<8x128xf32>
      %c0_23 = arith.constant 0 : index
      %c0_24 = arith.constant 0 : index
      %23 = vector.load %arg10[%c0_23, %c0_24] : memref<8x128xf32, #tpu.memory_space<vmem>>, vector<8x128xf32>
      tpu.vector_store %arg10[%c0_23, %c0_24], %22 {strides = array<i32>} : memref<8x128xf32, #tpu.memory_space<vmem>>, vector<8x128xf32>,
    } else {
    }
    %c0 = arith.constant 0 : index
    %c0_1 = arith.constant 0 : index
    %3 = vector.load %arg3[%c0, %c0_1] : memref<8x128xf32, #tpu.memory_space<vmem>>, vector<8x128xf32>
    %c0_2 = arith.constant 0 : index
    %c0_3 = arith.constant 0 : index
    %4 = vector.load %arg9[%c0_2, %c0_3] : memref<8x128xf32, #tpu.memory_space<vmem>>, vector<8x128xf32>
    %c0_4 = arith.constant 0 : index
    %c0_5 = arith.constant 0 : index
    %5 = vector.load %arg4[%c0_4, %c0_5] : memref<128x128xf32, #tpu.memory_space<vmem>>, vector<128x128xf32>
    %cst = arith.constant dense<0.000000e+00> : vector<8x128xf32>
    %6 = tpu.matmul %3, %5, %cst {dimension_numbers = #tpu.dot_dimension_numbers<[1], [0], [0], [1], [0, 0, 1, 1], [], []>} : vector<8x128xf32>, vector<128x128xf32>, vector<8x128xf32> -> vector<8x128xf32>
    %7 = arith.addf %4, %6 : vector<8x128xf32>
    %c0_6 = arith.constant 0 : index
    %c0_7 = arith.constant 0 : index
    %8 = vector.load %arg9[%c0_6, %c0_7] : memref<8x128xf32, #tpu.memory_space<vmem>>, vector<8x128xf32>
    tpu.vector_store %arg9[%c0_6, %c0_7], %7 {strides = array<i32>} : memref<8x128xf32, #tpu.memory_space<vmem>>, vector<8x128xf32>,
    %c0_8 = arith.constant 0 : index
    %c0_9 = arith.constant 0 : index
    %9 = vector.load %arg10[%c0_8, %c0_9] : memref<8x128xf32, #tpu.memory_space<vmem>>, vector<8x128xf32>
    %c0_10 = arith.constant 0 : index
    %c0_11 = arith.constant 0 : index
    %10 = vector.load %arg6[%c0_10, %c0_11] : memref<1x128xf32, #tpu.memory_space<vmem>>, vector<1x128xf32>
    %11 = vector.broadcast %10 : vector<1x128xf32> to vector<8x128xf32>
    %12 = arith.mulf %3, %11 : vector<8x128xf32>
    %c0_12 = arith.constant 0 : index
    %c0_13 = arith.constant 0 : index
    %13 = vector.load %arg5[%c0_12, %c0_13] : memref<128x128xf32, #tpu.memory_space<vmem>>, vector<128x128xf32>
    %cst_14 = arith.constant dense<0.000000e+00> : vector<8x128xf32>
    %14 = tpu.matmul %12, %13, %cst_14 {dimension_numbers = #tpu.dot_dimension_numbers<[1], [0], [0], [1], [0, 0, 1, 1], [], []>} : vector<8x128xf32>, vector<128x128xf32>, vector<8x128xf32> -> vector<8x128xf32>
    %15 = arith.addf %9, %14 : vector<8x128xf32>
    %c0_15 = arith.constant 0 : index
    %c0_16 = arith.constant 0 : index
    %16 = vector.load %arg10[%c0_15, %c0_16] : memref<8x128xf32, #tpu.memory_space<vmem>>, vector<8x128xf32>
    tpu.vector_store %arg10[%c0_15, %c0_16], %15 {strides = array<i32>} : memref<8x128xf32, #tpu.memory_space<vmem>>, vector<8x128xf32>,
    %c0_i32_17 = arith.constant 0 : i32
    %17 = arith.cmpi eq, %arg2, %c0_i32_17 : i32
    %18 = arith.extui %17 : i1 to i32
    %c0_i32_18 = arith.constant 0 : i32
    %19 = arith.cmpi ne, %18, %c0_i32_18 : i32
    scf.if %19 {
      %c0_19 = arith.constant 0 : index
      %c0_20 = arith.constant 0 : index
      %20 = vector.load %arg9[%c0_19, %c0_20] : memref<8x128xf32, #tpu.memory_space<vmem>>, vector<8x128xf32>
      %c0_21 = arith.constant 0 : index
      %c0_22 = arith.constant 0 : index
      %21 = vector.load %arg7[%c0_21, %c0_22] : memref<1x128xf32, #tpu.memory_space<vmem>>, vector<1x128xf32>
      %c0_23 = arith.constant 0 : index
      %c0_24 = arith.constant 0 : index
      %22 = vector.load %arg10[%c0_23, %c0_24] : memref<8x128xf32, #tpu.memory_space<vmem>>, vector<8x128xf32>
      %23 = vector.broadcast %21 : vector<1x128xf32> to vector<8x128xf32>
      %24 = arith.mulf %23, %22 : vector<8x128xf32>
      %c0_25 = arith.constant 0 : index
      %c0_26 = arith.constant 0 : index
      %25 = vector.load %arg8[%c0_25, %c0_26] : memref<1x128xf32, #tpu.memory_space<vmem>>, vector<1x128xf32>
      %26 = vector.broadcast %25 : vector<1x128xf32> to vector<8x128xf32>
      %27 = arith.addf %24, %26 : vector<8x128xf32>
      %28 = arith.addf %20, %27 : vector<8x128xf32>
      %c0_27 = arith.constant 0 : index
      %c0_28 = arith.constant 0 : index
      %29 = vector.load %arg9[%c0_27, %c0_28] : memref<8x128xf32, #tpu.memory_space<vmem>>, vector<8x128xf32>
      tpu.vector_store %arg9[%c0_27, %c0_28], %28 {strides = array<i32>} : memref<8x128xf32, #tpu.memory_space<vmem>>, vector<8x128xf32>,
    } else {
    }
    return
  }
  func.func @transform_0(%arg0: i32, %arg1: i32, %arg2: i32) -> (i32, i32) {
    %c0_i32 = arith.constant 0 : i32
    return %arg0, %arg2 : i32, i32
  }
  func.func @transform_1(%arg0: i32, %arg1: i32, %arg2: i32) -> (i32, i32) {
    %c0_i32 = arith.constant 0 : i32
    return %arg2, %arg1 : i32, i32
  }
  func.func @transform_2(%arg0: i32, %arg1: i32, %arg2: i32) -> (i32, i32) {
    %c0_i32 = arith.constant 0 : i32
    return %arg2, %arg1 : i32, i32
  }
  func.func @transform_3(%arg0: i32, %arg1: i32, %arg2: i32) -> (i32, i32) {
    %c0_i32 = arith.constant 0 : i32
    %c0_i32_0 = arith.constant 0 : i32
    return %c0_i32, %arg2 : i32, i32
  }
  func.func @transform_4(%arg0: i32, %arg1: i32, %arg2: i32) -> (i32, i32) {
    %c0_i32 = arith.constant 0 : i32
    %c0_i32_0 = arith.constant 0 : i32
    return %c0_i32, %arg1 : i32, i32
  }
  func.func @transform_5(%arg0: i32, %arg1: i32, %arg2: i32) -> (i32, i32) {
    %c0_i32 = arith.constant 0 : i32
    %c0_i32_0 = arith.constant 0 : i32
    return %c0_i32, %arg1 : i32, i32
  }
  func.func @transform_6(%arg0: i32, %arg1: i32, %arg2: i32) -> (i32, i32) {
    %c0_i32 = arith.constant 0 : i32
    return %arg0, %arg1 : i32, i32
  }
}

</mosaic_0001>

<llo_original>
// kernel: tpu_custom_call.1
$region0: #{tpu_custom_call.1}
  #allocation0 [shape = 'u32[]', space=smem, size = 0x4, offset = 0x4, fixed_abs, tag = 'smem constant byte address 0x4 - core index']
  #allocation1 [shape = 'u32[144,128]{1,0:T(1,128)}', space=vmem, size = 0x12000, scoped, tag = 'internal scratch']
  #allocation2 [shape = 'f32[8,128]{1,0:T(8,128)}', space=vmem, size = 0x1000, scoped, tag = 'scratch operand']
  %s0 = inlined_call_operand.hbm [shape: f32[8,128], index: 0, kind: input, shape index: {}]
  %s1 = inlined_call_operand.hbm [shape: f32[128,128], index: 1, kind: input, shape index: {}]
  %s2 = inlined_call_operand.hbm [shape: f32[128,128], index: 2, kind: input, shape index: {}]
  %s3 = inlined_call_operand.vmem [shape: f32[1,128], index: 3, kind: input, shape index: {}]
  %s4 = inlined_call_operand.vmem [shape: f32[1,128], index: 4, kind: input, shape index: {}]
  %s5 = inlined_call_operand.vmem [shape: f32[1,128], index: 5, kind: input, shape index: {}]
  %s6 = inlined_call_operand.hbm [shape: f32[8,128], index: 6, kind: output, shape index: {}]
  %s7 = sld [smem:[#allocation0]]
  $region54: #{tpu_custom_call.1} parent=0
    _
  %s9 = ssub.s32 1, %s7
  %s10 = scalar_select 0, %s9, %s7
  $region1: #{tpu_custom_call.1} parent=0
    #allocation3 [shape = 'u8[4096]{0}', space=vmem, size = 0x1000, scoped, tag = 'input window, operand 0, single buffered']
    #allocation4 [shape = 's32[1]{0}', space=sflag, size = 0x4, scoped, tag = 'scoped memory for tpu_custom_call.1']
    #allocation5 [shape = 's32[1]{0}', space=sflag, size = 0x4, scoped, tag = 'scoped memory for tpu_custom_call.1']
    #allocation6 [shape = 'u8[65536]{0}', space=vmem, size = 0x10000, scoped, tag = 'input window, operand 1, single buffered']
    #allocation7 [shape = 's32[1]{0}', space=sflag, size = 0x4, scoped, tag = 'scoped memory for tpu_custom_call.1']
    #allocation8 [shape = 'u8[65536]{0}', space=vmem, size = 0x10000, scoped, tag = 'input window, operand 2, single buffered']
    #allocation9 [shape = 'u8[4096]{0}', space=vmem, size = 0x1000, scoped, tag = 'output window, operand 0, single buffered']
    %11 = vsyncpa [#allocation4], 0
    %12 = vsyncpa [#allocation7], 0
    %13 = vsyncpa [#allocation5], 0
    // Predicated region
    $region2: #{tpu_custom_call.1} parent=1 // pred_check
      _
    $region3: #{tpu_custom_call.1} parent=1 // pred_check_branch
      %15 = sbr.rel (0) target = $region5
    $region4: #{tpu_custom_call.1} parent=1 // pred_region
      %s17 = ssub.s32 128, 128
      %18 = vsyncadd [#allocation4], %s17
      %s20 = sshll.u32 [#allocation3], 4
      %s21 = int_to_ptr.vmem [resolvable:$true] %s20
      %23 = dma.hbm_to_vmem [thread:$0]  %s0, 128, %s21, [#allocation4]
    $region5: #{tpu_custom_call.1} parent=1 // pred_fallthru
      _
    // Predicated region
    $region6: #{tpu_custom_call.1} parent=1 // pred_check
      _
    $region7: #{tpu_custom_call.1} parent=1 // pred_check_branch
      %25 = sbr.rel (0) target = $region9
    $region8: #{tpu_custom_call.1} parent=1 // pred_region
      %s27 = ssub.s32 2048, 2048
      %28 = vsyncadd [#allocation7], %s27
      %s29 = sshll.u32 [#allocation6], 4
      %s30 = int_to_ptr.vmem [resolvable:$true] %s29
      %35 = dma.hbm_to_vmem [thread:$0]  %s1, 2048, %s30, [#allocation7], 128, 128, 8
    $region9: #{tpu_custom_call.1} parent=1 // pred_fallthru
      _
    // Predicated region
    $region10: #{tpu_custom_call.1} parent=1 // pred_check
      _
    $region11: #{tpu_custom_call.1} parent=1 // pred_check_branch
      %37 = sbr.rel (0) target = $region13
    $region12: #{tpu_custom_call.1} parent=1 // pred_region
      %s39 = ssub.s32 2048, 2048
      %40 = vsyncadd [#allocation7], %s39
      %s41 = sshll.u32 [#allocation8], 4
      %s42 = int_to_ptr.vmem [resolvable:$true] %s41
      %47 = dma.hbm_to_vmem [thread:$0]  %s2, 2048, %s42, [#allocation7], 128, 128, 8
    $region13: #{tpu_custom_call.1} parent=1 // pred_fallthru
      _
    // Predicated region
    $region14: #{tpu_custom_call.1} parent=1 // pred_check
      _
    $region15: #{tpu_custom_call.1} parent=1 // pred_check_branch
      %49 = sbr.rel (0) target = $region17
    $region16: #{tpu_custom_call.1} parent=1 // pred_region
      _
    $region17: #{tpu_custom_call.1} parent=1 // pred_fallthru
      _
    // Predicated region
    $region18: #{tpu_custom_call.1} parent=1 // pred_check
      _
    $region19: #{tpu_custom_call.1} parent=1 // pred_check_branch
      %51 = sbr.rel (0) target = $region21
    $region20: #{tpu_custom_call.1} parent=1 // pred_region
      _
    $region21: #{tpu_custom_call.1} parent=1 // pred_fallthru
      _
    // Predicated region
    $region22: #{tpu_custom_call.1} parent=1 // pred_check
      _
    $region23: #{tpu_custom_call.1} parent=1 // pred_check_branch
      %53 = sbr.rel (0) target = $region25
    $region24: #{tpu_custom_call.1} parent=1 // pred_region
      _
    $region25: #{tpu_custom_call.1} parent=1 // pred_fallthru
      _
    // Predicated region
    $region26: #{tpu_custom_call.1} parent=1 // pred_check
      _
    $region27: #{tpu_custom_call.1} parent=1 // pred_check_branch
      %55 = sbr.rel (0) target = $region29
    $region28: #{tpu_custom_call.1} parent=1 // pred_region
      %56 = dma.done [#allocation4], 128
    $region29: #{tpu_custom_call.1} parent=1 // pred_fallthru
      _
    // Predicated region
    $region30: #{tpu_custom_call.1} parent=1 // pred_check
      _
    $region31: #{tpu_custom_call.1} parent=1 // pred_check_branch
      %58 = sbr.rel (0) target = $region33
    $region32: #{tpu_custom_call.1} parent=1 // pred_region
      %59 = dma.done [#allocation7], 2048
    $region33: #{tpu_custom_call.1} parent=1 // pred_fallthru
      _
    // Predicated region
    $region34: #{tpu_custom_call.1} parent=1 // pred_check
      _
    $region35: #{tpu_custom_call.1} parent=1 // pred_check_branch
      %61 = sbr.rel (0) target = $region37
    $region36: #{tpu_custom_call.1} parent=1 // pred_region
      %62 = dma.done [#allocation7], 2048
    $region37: #{tpu_custom_call.1} parent=1 // pred_fallthru
      _
    %p63 = scmp.eq.s32.totalorder 0, 0
    // Predicated region
    $region38: #{tpu_custom_call.1} parent=1 // pred_check
      %p64 = pneg %p63
    $region39: #{tpu_custom_call.1} parent=1 // pred_check_branch
      %66 = sbr.rel (%p64) target = $region41
    $region40: #{tpu_custom_call.1} parent=1 // pred_region
      %67 = vst [vmem:[#allocation9] sm:$0xff] 0.0
      %68 = vst [vmem:[#allocation2] sm:$0xff] 0.0
    $region41: #{tpu_custom_call.1} parent=1 // pred_fallthru
      _
    %v69 = vld [vmem:[#allocation3] sm:$0xff]
    %v70 = vld [vmem:[#allocation9] sm:$0xff]
    %v71 = vld [vmem:[#allocation6] sm:$0xff]
    %v72 = vld [vmem:[#allocation6 + $0x8] sm:$0xff]
    %v73 = vld [vmem:[#allocation6 + $0x10] sm:$0xff]
    %v74 = vld [vmem:[#allocation6 + $0x18] sm:$0xff]
    %v75 = vld [vmem:[#allocation6 + $0x20] sm:$0xff]
    %v76 = vld [vmem:[#allocation6 + $0x28] sm:$0xff]
    %v77 = vld [vmem:[#allocation6 + $0x30] sm:$0xff]
    %v78 = vld [vmem:[#allocation6 + $0x38] sm:$0xff]
    %v79 = vld [vmem:[#allocation6 + $0x40] sm:$0xff]
    %v80 = vld [vmem:[#allocation6 + $0x48] sm:$0xff]
    %v81 = vld [vmem:[#allocation6 + $0x50] sm:$0xff]
    %v82 = vld [vmem:[#allocation6 + $0x58] sm:$0xff]
    %v83 = vld [vmem:[#allocation6 + $0x60] sm:$0xff]
    %v84 = vld [vmem:[#allocation6 + $0x68] sm:$0xff]
    %v85 = vld [vmem:[#allocation6 + $0x70] sm:$0xff]
    %v86 = vld [vmem:[#allocation6 + $0x78] sm:$0xff]
    %87 = vmatprep.subr.mxu0 0.0
    %88 = vmatpush1.msra.mxu0 %v86
    %89 = vmatprep.subr.mxu0 0.0
    %90 = vmatpush1.msra.mxu0 %v85
    %91 = vmatprep.subr.mxu0 0.0
    %92 = vmatpush1.msra.mxu0 %v84
    %93 = vmatprep.subr.mxu0 0.0
    %94 = vmatpush1.msra.mxu0 %v83
    %95 = vmatprep.subr.mxu0 0.0
    %96 = vmatpush1.msra.mxu0 %v82
    %97 = vmatprep.subr.mxu0 0.0
    %98 = vmatpush1.msra.mxu0 %v81
    %99 = vmatprep.subr.mxu0 0.0
    %100 = vmatpush1.msra.mxu0 %v80
    %101 = vmatprep.subr.mxu0 0.0
    %102 = vmatpush1.msra.mxu0 %v79
    %103 = vmatprep.subr.mxu0 0.0
    %104 = vmatpush1.msra.mxu0 %v78
    %105 = vmatprep.subr.mxu0 0.0
    %106 = vmatpush1.msra.mxu0 %v77
    %107 = vmatprep.subr.mxu0 0.0
    %108 = vmatpush1.msra.mxu0 %v76
    %109 = vmatprep.subr.mxu0 0.0
    %110 = vmatpush1.msra.mxu0 %v75
    %111 = vmatprep.subr.mxu0 0.0
    %112 = vmatpush1.msra.mxu0 %v74
    %113 = vmatprep.subr.mxu0 0.0
    %114 = vmatpush1.msra.mxu0 %v73
    %115 = vmatprep.subr.mxu0 0.0
    %116 = vmatpush1.msra.mxu0 %v72
    %117 = vmatprep.subr.mxu0 0.0
    %118 = vmatpush1.msra.mxu0 %v71
    %119 = vmatprep.subr.mxu0 0.0
    %120 = vmatpush2.msra.mxu0 0.0
    %121 = vmatprep.subr.mxu0 0.0
    %122 = vmatpush2.msra.mxu0 0.0
    %123 = vmatprep.subr.mxu0 0.0
    %124 = vmatpush2.msra.mxu0 0.0
    %125 = vmatprep.subr.mxu0 0.0
    %126 = vmatpush2.msra.mxu0 0.0
    %127 = vmatprep.subr.mxu0 0.0
    %128 = vmatpush2.msra.mxu0 0.0
    %129 = vmatprep.subr.mxu0 0.0
    %130 = vmatpush2.msra.mxu0 0.0
    %131 = vmatprep.subr.mxu0 0.0
    %132 = vmatpush2.msra.mxu0 0.0
    %133 = vmatprep.subr.mxu0 0.0
    %134 = vmatpush2.msra.mxu0 0.0
    %135 = vmatprep.subr.mxu0 0.0
    %136 = vmatpush2.msra.mxu0 0.0
    %137 = vmatprep.subr.mxu0 0.0
    %138 = vmatpush2.msra.mxu0 0.0
    %139 = vmatprep.subr.mxu0 0.0
    %140 = vmatpush2.msra.mxu0 0.0
    %141 = vmatprep.subr.mxu0 0.0
    %142 = vmatpush2.msra.mxu0 0.0
    %143 = vmatprep.subr.mxu0 0.0
    %144 = vmatpush2.msra.mxu0 0.0
    %145 = vmatprep.subr.mxu0 0.0
    %146 = vmatpush2.msra.mxu0 0.0
    %147 = vmatprep.subr.mxu0 0.0
    %148 = vmatpush2.msra.mxu0 0.0
    %149 = vmatprep.subr.mxu0 0.0
    %150 = vmatpush2.msra.mxu0 0.0
    %151 = vmatprep.mubr.f32.mxu0 0.0
    %152 = vmatmul.mubr.f32.gmra.mxu0 %v69
    %v153 = vpop.f32.mrf.mxu0
    %v154 = vadd.f32 0.0, %v153
    %v155 = vpop.f32.mrf.mxu0
    %156 = vdwg.mxu0
    %v157 = vadd.f32 %v70, %v154
    %158 = vst [vmem:[#allocation9] sm:$0xff] %v157
    %v159 = vld [vmem:[#allocation2] sm:$0xff]
    %v160 = vld [vmem:[%s3] sm:$0x1]
    %v162 = vlaneseq
    %v163 = vshrl.u32 %v162, 7
    %v164 = vsub.s32 0, %v163
    %v165 = vrot.slane %v160, %v164
    %v167 = vmul.f32 %v69, %v165
    %v168 = vld [vmem:[#allocation8] sm:$0xff]
    %v169 = vld [vmem:[#allocation8 + $0x8] sm:$0xff]
    %v170 = vld [vmem:[#allocation8 + $0x10] sm:$0xff]
    %v171 = vld [vmem:[#allocation8 + $0x18] sm:$0xff]
    %v172 = vld [vmem:[#allocation8 + $0x20] sm:$0xff]
    %v173 = vld [vmem:[#allocation8 + $0x28] sm:$0xff]
    %v174 = vld [vmem:[#allocation8 + $0x30] sm:$0xff]
    %v175 = vld [vmem:[#allocation8 + $0x38] sm:$0xff]
    %v176 = vld [vmem:[#allocation8 + $0x40] sm:$0xff]
    %v177 = vld [vmem:[#allocation8 + $0x48] sm:$0xff]
    %v178 = vld [vmem:[#allocation8 + $0x50] sm:$0xff]
    %v179 = vld [vmem:[#allocation8 + $0x58] sm:$0xff]
    %v180 = vld [vmem:[#allocation8 + $0x60] sm:$0xff]
    %v181 = vld [vmem:[#allocation8 + $0x68] sm:$0xff]
    %v182 = vld [vmem:[#allocation8 + $0x70] sm:$0xff]
    %v183 = vld [vmem:[#allocation8 + $0x78] sm:$0xff]
    %184 = vmatprep.subr.mxu0 0.0
    %185 = vmatpush1.msra.mxu0 %v183
    %186 = vmatprep.subr.mxu0 0.0
    %187 = vmatpush1.msra.mxu0 %v182
    %188 = vmatprep.subr.mxu0 0.0
    %189 = vmatpush1.msra.mxu0 %v181
    %190 = vmatprep.subr.mxu0 0.0
    %191 = vmatpush1.msra.mxu0 %v180
    %192 = vmatprep.subr.mxu0 0.0
    %193 = vmatpush1.msra.mxu0 %v179
    %194 = vmatprep.subr.mxu0 0.0
    %195 = vmatpush1.msra.mxu0 %v178
    %196 = vmatprep.subr.mxu0 0.0
    %197 = vmatpush1.msra.mxu0 %v177
    %198 = vmatprep.subr.mxu0 0.0
    %199 = vmatpush1.msra.mxu0 %v176
    %200 = vmatprep.subr.mxu0 0.0
    %201 = vmatpush1.msra.mxu0 %v175
    %202 = vmatprep.subr.mxu0 0.0
    %203 = vmatpush1.msra.mxu0 %v174
    %204 = vmatprep.subr.mxu0 0.0
    %205 = vmatpush1.msra.mxu0 %v173
    %206 = vmatprep.subr.mxu0 0.0
    %207 = vmatpush1.msra.mxu0 %v172
    %208 = vmatprep.subr.mxu0 0.0
    %209 = vmatpush1.msra.mxu0 %v171
    %210 = vmatprep.subr.mxu0 0.0
    %211 = vmatpush1.msra.mxu0 %v170
    %212 = vmatprep.subr.mxu0 0.0
    %213 = vmatpush1.msra.mxu0 %v169
    %214 = vmatprep.subr.mxu0 0.0
    %215 = vmatpush1.msra.mxu0 %v168
    %216 = vmatprep.subr.mxu0 0.0
    %217 = vmatpush2.msra.mxu0 0.0
    %218 = vmatprep.subr.mxu0 0.0
    %219 = vmatpush2.msra.mxu0 0.0
    %220 = vmatprep.subr.mxu0 0.0
    %221 = vmatpush2.msra.mxu0 0.0
    %222 = vmatprep.subr.mxu0 0.0
    %223 = vmatpush2.msra.mxu0 0.0
    %224 = vmatprep.subr.mxu0 0.0
    %225 = vmatpush2.msra.mxu0 0.0
    %226 = vmatprep.subr.mxu0 0.0
    %227 = vmatpush2.msra.mxu0 0.0
    %228 = vmatprep.subr.mxu0 0.0
    %229 = vmatpush2.msra.mxu0 0.0
    %230 = vmatprep.subr.mxu0 0.0
    %231 = vmatpush2.msra.mxu0 0.0
    %232 = vmatprep.subr.mxu0 0.0
    %233 = vmatpush2.msra.mxu0 0.0
    %234 = vmatprep.subr.mxu0 0.0
    %235 = vmatpush2.msra.mxu0 0.0
    %236 = vmatprep.subr.mxu0 0.0
    %237 = vmatpush2.msra.mxu0 0.0
    %238 = vmatprep.subr.mxu0 0.0
    %239 = vmatpush2.msra.mxu0 0.0
    %240 = vmatprep.subr.mxu0 0.0
    %241 = vmatpush2.msra.mxu0 0.0
    %242 = vmatprep.subr.mxu0 0.0
    %243 = vmatpush2.msra.mxu0 0.0
    %244 = vmatprep.subr.mxu0 0.0
    %245 = vmatpush2.msra.mxu0 0.0
    %246 = vmatprep.subr.mxu0 0.0
    %247 = vmatpush2.msra.mxu0 0.0
    %248 = vmatprep.mubr.f32.mxu0 0.0
    %249 = vmatmul.mubr.f32.gmra.mxu0 %v167
    %v250 = vpop.f32.mrf.mxu0
    %v251 = vadd.f32 0.0, %v250
    %v252 = vpop.f32.mrf.mxu0
    %253 = vdwg.mxu0
    %v254 = vadd.f32 %v159, %v251
    %255 = vst [vmem:[#allocation2] sm:$0xff] %v254
    // Predicated region
    $region42: #{tpu_custom_call.1} parent=1 // pred_check
      %p256 = pneg %p63
    $region43: #{tpu_custom_call.1} parent=1 // pred_check_branch
      %258 = sbr.rel (%p256) target = $region45
    $region44: #{tpu_custom_call.1} parent=1 // pred_region
      %v259 = vld [vmem:[#allocation9] sm:$0xff]
      %v260 = vld [vmem:[%s4] sm:$0x1]
      %v261 = vld [vmem:[#allocation2] sm:$0xff]
      %v263 = vlaneseq
      %v264 = vshrl.u32 %v263, 7
      %v265 = vsub.s32 0, %v264
      %v266 = vrot.slane %v260, %v265
      %v268 = vmul.f32 %v266, %v261
      %v269 = vld [vmem:[%s5] sm:$0x1]
      %v271 = vlaneseq
      %v272 = vshrl.u32 %v271, 7
      %v273 = vsub.s32 0, %v272
      %v274 = vrot.slane %v269, %v273
      %v276 = vadd.f32 %v268, %v274
      %v277 = vadd.f32 %v259, %v276
      %278 = vst [vmem:[#allocation9] sm:$0xff] %v277
    $region45: #{tpu_custom_call.1} parent=1 // pred_fallthru
      _
    // Predicated region
    $region46: #{tpu_custom_call.1} parent=1 // pred_check
      _
    $region47: #{tpu_custom_call.1} parent=1 // pred_check_branch
      %280 = sbr.rel (0) target = $region49
    $region48: #{tpu_custom_call.1} parent=1 // pred_region
      %s282 = ssub.s32 128, 128
      %283 = vsyncadd [#allocation5], %s282
      %s285 = sshll.u32 [#allocation9], 4
      %s286 = int_to_ptr.vmem [resolvable:$true] %s285
      %288 = dma.vmem_to_hbm [thread:$0]  %s286, 128, %s6, [#allocation5]
    $region49: #{tpu_custom_call.1} parent=1 // pred_fallthru
      _
    // Predicated region
    $region50: #{tpu_custom_call.1} parent=1 // pred_check
      _
    $region51: #{tpu_custom_call.1} parent=1 // pred_check_branch
      %290 = sbr.rel (0) target = $region53
    $region52: #{tpu_custom_call.1} parent=1 // pred_region
      %291 = dma.done [#allocation5], 128
    $region53: #{tpu_custom_call.1} parent=1 // pred_fallthru
      _
    %292 = vsyncpa [#allocation4], 1
    %293 = vsyncpa [#allocation7], 1
    %294 = vsyncpa [#allocation5], 1

</llo_original>
